<compile_context>
chip_gen: v7x
topology: tpu7x:2x2x1
jax: 0.10.0
libtpu: 0.0.40
codegen_flags: <defaults>
</compile_context>

<pallas_src>
import functools

import jax
import jax.numpy as jnp
from jax.experimental import pallas as pl
from jax.experimental.pallas import tpu as pltpu


# --------------------------------------------------------------------------- #
# Kernel
# --------------------------------------------------------------------------- #
def _qnet_kernel(xt_ref, w1_ref, b1_ref, w2_ref, b2_ref, wh_ref, bh_ref, out_ref):
    """Fused forward for one batch tile, batch-on-lanes layout:
         h1T = relu(W1 @ xT + b1); h2T = relu(W2 @ h1T + b2); QT = Wh @ h2T + bh
       The dueling head is pre-folded into (Wh, bh), so there is no branch here.
    """
    xt = xt_ref[...]                                                   # (S, TB)

    # Layer 1: (64, S) @ (S, TB) -> f32 accumulation on the MXU.
    h1 = jnp.dot(w1_ref[...], xt.astype(w1_ref.dtype),
                 preferred_element_type=jnp.float32)
    h1 = jnp.maximum(h1 + b1_ref[...], 0.0)                            # (64, TB) f32

    # Layer 2: (32, 64) @ (64, TB)
    h2 = jnp.dot(w2_ref[...], h1.astype(w2_ref.dtype),
                 preferred_element_type=jnp.float32)
    h2 = jnp.maximum(h2 + b2_ref[...], 0.0)                            # (32, TB) f32

    # Head: (A, 32) @ (32, TB) — lane-dense store of the whole (A, TB) tile.
    q = jnp.dot(wh_ref[...], h2.astype(wh_ref.dtype),
                preferred_element_type=jnp.float32)
    out_ref[...] = (q + bh_ref[...]).astype(out_ref.dtype)


# --------------------------------------------------------------------------- #
# One-time parameter preparation (off the hot path)
# --------------------------------------------------------------------------- #
def prepare_params(params, *, use_duel_dqn: bool = False,
                   compute_dtype=jnp.float32):
    """Keep PyTorch (out, in) weight layout (batch-on-lanes needs no transpose)
    and fold the dueling head exactly:  Wh = W3 + Wv (broadcast), bh = b3 + bv.
    Fold is done in f32, then cast to compute_dtype.  Biases stay f32 so the
    post-matmul add/ReLU path is f32 (v5e-safe)."""
    w1 = params["w1"].astype(compute_dtype)                 # (64, S)
    b1 = params["b1"].reshape(-1, 1).astype(jnp.float32)     # (64, 1)
    w2 = params["w2"].astype(compute_dtype)                 # (32, 64)
    b2 = params["b2"].reshape(-1, 1).astype(jnp.float32)     # (32, 1)

    if use_duel_dqn:
        wh = params["w3"] + params["wv"]                     # (A,32)+(1,32)->(A,32)
        bh = params["b3"] + params["bv"]                     # (A,)
    else:
        wh = params["w3"]
        bh = params["b3"]

    return dict(w1=w1, b1=b1, w2=w2, b2=b2,
                wh=wh.astype(compute_dtype),
                bh=bh.reshape(-1, 1).astype(jnp.float32))     # (A, 1)


# --------------------------------------------------------------------------- #
# Forward wrapper
# --------------------------------------------------------------------------- #
def _round_up(x, m):
    return ((x + m - 1) // m) * m


@functools.partial(jax.jit, static_argnames=("block_batch",))
def qnetwork_forward(state, prepped, *, block_batch: int = 8192):
    """Fused QNetwork forward: one pallas_call, batch tiled along the lane axis.

    Pays one cheap XLA transpose on the way in ((B,S)->(S,B)) and one on the way
    out ((A,B)->(B,A)) so the module-level semantics (state (B,S) -> Q (B,A))
    are preserved while every in-kernel store is lane-dense."""
    B, S = state.shape
    A = prepped["wh"].shape[0]
    compute_dtype = prepped["w1"].dtype

    # Batch tile selection:
    #  * tiny batch  -> single full-extent block (always legal, grid = 1)
    #  * otherwise   -> >= 2 lane-aligned (multiple-of-128) tiles, capped at
    #                   block_batch, so v7x can shard the "parallel" axis over
    #                   both TensorCores and per-step overhead stays amortized.
    if B <= 256:
        tb = B
    else:
        tb = min(_round_up(block_batch, 128),
                 _round_up(pl.cdiv(B, 2), 128))
    grid = (pl.cdiv(B, tb),)

    xt = state.T.astype(compute_dtype)                       # (S, B)

    tile_map = lambda i: (0, i)      # batch-tiled arrays (xT, QT): lane axis tiled
    const_map = lambda i: (0, 0)     # resident weights / biases

    consts = (prepped["w1"], prepped["b1"], prepped["w2"], prepped["b2"],
              prepped["wh"], prepped["bh"])

    in_specs = [pl.BlockSpec((S, tb), tile_map)]
    in_specs += [pl.BlockSpec(a.shape, const_map) for a in consts]
    out_specs = pl.BlockSpec((A, tb), tile_map)

    q_t = pl.pallas_call(
        _qnet_kernel,
        out_shape=jax.ShapeDtypeStruct((A, B), jnp.float32),
        grid=grid,
        in_specs=in_specs,
        out_specs=out_specs,
        compiler_params=pltpu.CompilerParams(
            dimension_semantics=("parallel",)),   # v7x: shard batch over 2 TCs
    )(xt, *consts)

    return q_t.T                                              # (B, A)


# --------------------------------------------------------------------------- #
# Synthetic init + pure-JAX reference
# --------------------------------------------------------------------------- #
def init_params(key, state_size, action_size):
    """Deterministic synthetic parameter init (PyTorch Linear shapes)."""
    ks = jax.random.split(key, 8)

    def lin(kw, kb, out_f, in_f):
        bound = 1.0 / jnp.sqrt(in_f)
        w = jax.random.uniform(kw, (out_f, in_f), jnp.float32, -bound, bound)
        b = jax.random.uniform(kb, (out_f,), jnp.float32, -bound, bound)
        return w, b

    w1, b1 = lin(ks[0], ks[1], 64, state_size)
    w2, b2 = lin(ks[2], ks[3], 32, 64)
    w3, b3 = lin(ks[4], ks[5], action_size, 32)
    wv, bv = lin(ks[6], ks[7], 1, 32)
    return dict(w1=w1, b1=b1, w2=w2, b2=b2, w3=w3, b3=b3, wv=wv, bv=bv)


def _reference_forward(state, p, use_duel_dqn):
    h1 = jnp.maximum(state @ p["w1"].T + p["b1"], 0.0)
    h2 = jnp.maximum(h1 @ p["w2"].T + p["b2"], 0.0)
    q = h2 @ p["w3"].T + p["b3"]
    if use_duel_dqn:
        # Matches the PyTorch module exactly: fc3(x) + v(x) (no mean-adv. subtraction).
        q = q + (h2 @ p["wv"].T + p["bv"])
    return q


# --------------------------------------------------------------------------- #
# Self-test
# --------------------------------------------------------------------------- #
if __name__ == "__main__":
    state_size = 8
    action_size = 4

    key = jax.random.PRNGKey(0)
    k_params, k_small, k_big = jax.random.split(key, 3)
    params = init_params(k_params, state_size, action_size)

    ok = True

    # Small batch (single full-extent block), f32 path, tight tolerance.
    state_small = jax.random.normal(k_small, (2, state_size), jnp.float32)
    for use_duel in (False, True):
        prepped = prepare_params(params, use_duel_dqn=use_duel)
        out = jax.block_until_ready(qnetwork_forward(state_small, prepped))
        ref = _reference_forward(state_small, params, use_duel)
        if not jnp.allclose(out, ref, atol=1e-5, rtol=1e-5):
            ok = False

    # Tiled path: grid > 1 with a partial last block (300 rows, 128-row tiles).
    state_big = jax.random.normal(k_big, (300, state_size), jnp.float32)
    for use_duel in (False, True):
        prepped = prepare_params(params, use_duel_dqn=use_duel)
        out = jax.block_until_ready(
            qnetwork_forward(state_big, prepped, block_batch=128))
        ref = _reference_forward(state_big, params, use_duel)
        if not jnp.allclose(out, ref, atol=1e-5, rtol=1e-5):
            ok = False

    # bf16 weights/activations (looser tolerance; accumulation stays f32).
    for use_duel in (False, True):
        prepped_bf16 = prepare_params(params, use_duel_dqn=use_duel,
                                      compute_dtype=jnp.bfloat16)
        out = jax.block_until_ready(
            qnetwork_forward(state_big, prepped_bf16, block_batch=128))
        ref = _reference_forward(state_big, params, use_duel)
        if not jnp.allclose(out, ref, atol=5e-2, rtol=5e-2):
            ok = False

    if ok:
        print("KERNEL_OK")
</pallas_src>

<mosaic_0001>
module attributes {stable_mosaic.version = 11 : i64} {
  func.func @_qnet_kernel(%arg0: i32, %arg1: memref<8x2xf32, #tpu.memory_space<vmem>>, %arg2: memref<64x8xf32, #tpu.memory_space<vmem>>, %arg3: memref<64x1xf32, #tpu.memory_space<vmem>>, %arg4: memref<32x64xf32, #tpu.memory_space<vmem>>, %arg5: memref<32x1xf32, #tpu.memory_space<vmem>>, %arg6: memref<4x32xf32, #tpu.memory_space<vmem>>, %arg7: memref<4x1xf32, #tpu.memory_space<vmem>>, %arg8: memref<4x2xf32, #tpu.memory_space<vmem>>) attributes {dimension_semantics = [#tpu.dimension_semantics<parallel>], iteration_bounds = array<i64: 1>, scalar_prefetch = 0 : i64, scratch_operands = 0 : i64, tpu.core_type = #tpu.core_type<tc>, window_params = [{transform_indices = @transform_0, window_bounds = array<i64: 8, 2>}, {pipeline_mode = #tpu.pipeline_mode<synchronous>, transform_indices = @transform_1, window_bounds = array<i64: 64, 8>}, {pipeline_mode = #tpu.pipeline_mode<synchronous>, transform_indices = @transform_2, window_bounds = array<i64: 64, 1>}, {pipeline_mode = #tpu.pipeline_mode<synchronous>, transform_indices = @transform_3, window_bounds = array<i64: 32, 64>}, {pipeline_mode = #tpu.pipeline_mode<synchronous>, transform_indices = @transform_4, window_bounds = array<i64: 32, 1>}, {pipeline_mode = #tpu.pipeline_mode<synchronous>, transform_indices = @transform_5, window_bounds = array<i64: 4, 32>}, {pipeline_mode = #tpu.pipeline_mode<synchronous>, transform_indices = @transform_6, window_bounds = array<i64: 4, 1>}, {transform_indices = @transform_7, window_bounds = array<i64: 4, 2>}]} {
    %c0 = arith.constant 0 : index
    %c0_0 = arith.constant 0 : index
    %0 = vector.load %arg1[%c0, %c0_0] : memref<8x2xf32, #tpu.memory_space<vmem>>, vector<8x2xf32>
    %c0_1 = arith.constant 0 : index
    %c0_2 = arith.constant 0 : index
    %1 = vector.load %arg2[%c0_1, %c0_2] : memref<64x8xf32, #tpu.memory_space<vmem>>, vector<64x8xf32>
    %cst = arith.constant dense<0.000000e+00> : vector<64x2xf32>
    %2 = tpu.matmul %1, %0, %cst {dimension_numbers = #tpu.dot_dimension_numbers<[1], [0], [0], [1], [0, 0, 1, 1], [], []>} : vector<64x8xf32>, vector<8x2xf32>, vector<64x2xf32> -> vector<64x2xf32>
    %c0_3 = arith.constant 0 : index
    %c0_4 = arith.constant 0 : index
    %3 = vector.load %arg3[%c0_3, %c0_4] : memref<64x1xf32, #tpu.memory_space<vmem>>, vector<64x1xf32>
    %4 = vector.broadcast %3 : vector<64x1xf32> to vector<64x2xf32>
    %5 = arith.addf %2, %4 : vector<64x2xf32>
    %cst_5 = arith.constant 0.000000e+00 : f32
    %6 = vector.broadcast %cst_5 : f32 to vector<64x2xf32>
    %7 = arith.maximumf %5, %6 : vector<64x2xf32>
    %c0_6 = arith.constant 0 : index
    %c0_7 = arith.constant 0 : index
    %8 = vector.load %arg4[%c0_6, %c0_7] : memref<32x64xf32, #tpu.memory_space<vmem>>, vector<32x64xf32>
    %cst_8 = arith.constant dense<0.000000e+00> : vector<32x2xf32>
    %9 = tpu.matmul %8, %7, %cst_8 {dimension_numbers = #tpu.dot_dimension_numbers<[1], [0], [0], [1], [0, 0, 1, 1], [], []>} : vector<32x64xf32>, vector<64x2xf32>, vector<32x2xf32> -> vector<32x2xf32>
    %c0_9 = arith.constant 0 : index
    %c0_10 = arith.constant 0 : index
    %10 = vector.load %arg5[%c0_9, %c0_10] : memref<32x1xf32, #tpu.memory_space<vmem>>, vector<32x1xf32>
    %11 = vector.broadcast %10 : vector<32x1xf32> to vector<32x2xf32>
    %12 = arith.addf %9, %11 : vector<32x2xf32>
    %cst_11 = arith.constant 0.000000e+00 : f32
    %13 = vector.broadcast %cst_11 : f32 to vector<32x2xf32>
    %14 = arith.maximumf %12, %13 : vector<32x2xf32>
    %c0_12 = arith.constant 0 : index
    %c0_13 = arith.constant 0 : index
    %15 = vector.load %arg6[%c0_12, %c0_13] : memref<4x32xf32, #tpu.memory_space<vmem>>, vector<4x32xf32>
    %cst_14 = arith.constant dense<0.000000e+00> : vector<4x2xf32>
    %16 = tpu.matmul %15, %14, %cst_14 {dimension_numbers = #tpu.dot_dimension_numbers<[1], [0], [0], [1], [0, 0, 1, 1], [], []>} : vector<4x32xf32>, vector<32x2xf32>, vector<4x2xf32> -> vector<4x2xf32>
    %c0_15 = arith.constant 0 : index
    %c0_16 = arith.constant 0 : index
    %17 = vector.load %arg7[%c0_15, %c0_16] : memref<4x1xf32, #tpu.memory_space<vmem>>, vector<4x1xf32>
    %18 = vector.broadcast %17 : vector<4x1xf32> to vector<4x2xf32>
    %19 = arith.addf %16, %18 : vector<4x2xf32>
    %c0_17 = arith.constant 0 : index
    %c0_18 = arith.constant 0 : index
    %20 = vector.load %arg8[%c0_17, %c0_18] : memref<4x2xf32, #tpu.memory_space<vmem>>, vector<4x2xf32>
    tpu.vector_store %arg8[%c0_17, %c0_18], %19 {strides = array<i32>} : memref<4x2xf32, #tpu.memory_space<vmem>>, vector<4x2xf32>,
    return
  }
  func.func @transform_0(%arg0: i32) -> (i32, i32) {
    %c0_i32 = arith.constant 0 : i32
    %c0_i32_0 = arith.constant 0 : i32
    return %c0_i32, %arg0 : i32, i32
  }
  func.func @transform_1(%arg0: i32) -> (i32, i32) {
    %c0_i32 = arith.constant 0 : i32
    %c0_i32_0 = arith.constant 0 : i32
    %c0_i32_1 = arith.constant 0 : i32
    return %c0_i32, %c0_i32_0 : i32, i32
  }
  func.func @transform_2(%arg0: i32) -> (i32, i32) {
    %c0_i32 = arith.constant 0 : i32
    %c0_i32_0 = arith.constant 0 : i32
    %c0_i32_1 = arith.constant 0 : i32
    return %c0_i32, %c0_i32_0 : i32, i32
  }
  func.func @transform_3(%arg0: i32) -> (i32, i32) {
    %c0_i32 = arith.constant 0 : i32
    %c0_i32_0 = arith.constant 0 : i32
    %c0_i32_1 = arith.constant 0 : i32
    return %c0_i32, %c0_i32_0 : i32, i32
  }
  func.func @transform_4(%arg0: i32) -> (i32, i32) {
    %c0_i32 = arith.constant 0 : i32
    %c0_i32_0 = arith.constant 0 : i32
    %c0_i32_1 = arith.constant 0 : i32
    return %c0_i32, %c0_i32_0 : i32, i32
  }
  func.func @transform_5(%arg0: i32) -> (i32, i32) {
    %c0_i32 = arith.constant 0 : i32
    %c0_i32_0 = arith.constant 0 : i32
    %c0_i32_1 = arith.constant 0 : i32
    return %c0_i32, %c0_i32_0 : i32, i32
  }
  func.func @transform_6(%arg0: i32) -> (i32, i32) {
    %c0_i32 = arith.constant 0 : i32
    %c0_i32_0 = arith.constant 0 : i32
    %c0_i32_1 = arith.constant 0 : i32
    return %c0_i32, %c0_i32_0 : i32, i32
  }
  func.func @transform_7(%arg0: i32) -> (i32, i32) {
    %c0_i32 = arith.constant 0 : i32
    %c0_i32_0 = arith.constant 0 : i32
    return %c0_i32, %arg0 : i32, i32
  }
}

</mosaic_0001>

<llo_original>
// kernel: qnetwork_forward.1
$region0: #{qnetwork_forward.1}
  #allocation0 [shape = 'u32[]', space=smem, size = 0x4, offset = 0x4, fixed_abs, tag = 'smem constant byte address 0x4 - core index']
  #allocation1 [shape = 'u32[144,128]{1,0:T(1,128)}', space=vmem, size = 0x12000, scoped, tag = 'internal scratch']
  %s0 = inlined_call_operand.vmem [shape: f32[8,2], index: 0, kind: input, shape index: {}]
  %s1 = inlined_call_operand.vmem [shape: f32[64,8], index: 1, kind: input, shape index: {}]
  %s2 = inlined_call_operand.vmem [shape: f32[64,1], index: 2, kind: input, shape index: {}]
  %s3 = inlined_call_operand.vmem [shape: f32[32,64], index: 3, kind: input, shape index: {}]
  %s4 = inlined_call_operand.vmem [shape: f32[32,1], index: 4, kind: input, shape index: {}]
  %s5 = inlined_call_operand.vmem [shape: f32[4,32], index: 5, kind: input, shape index: {}]
  %s6 = inlined_call_operand.vmem [shape: f32[4,1], index: 6, kind: input, shape index: {}]
  %s7 = inlined_call_operand.vmem [shape: f32[4,2], index: 7, kind: output, shape index: {}]
  %s8 = sld [smem:[#allocation0]]
  $region38: #{qnetwork_forward.1} parent=0
    _
  %s10 = ssub.s32 1, %s8
  %s11 = scalar_select 0, %s10, %s8
  // Predicated region
  $region2: #{qnetwork_forward.1} parent=0 // pred_check
    _
  $region3: #{qnetwork_forward.1} parent=0 // pred_check_branch
    %13 = sbr.rel (0) target = $region5
  $region4: #{qnetwork_forward.1} parent=0 // pred_region
    _
  $region5: #{qnetwork_forward.1} parent=0 // pred_fallthru
    _
  // Predicated region
  $region6: #{qnetwork_forward.1} parent=0 // pred_check
    _
  $region7: #{qnetwork_forward.1} parent=0 // pred_check_branch
    %15 = sbr.rel (0) target = $region9
  $region8: #{qnetwork_forward.1} parent=0 // pred_region
    _
  $region9: #{qnetwork_forward.1} parent=0 // pred_fallthru
    _
  // Predicated region
  $region10: #{qnetwork_forward.1} parent=0 // pred_check
    _
  $region11: #{qnetwork_forward.1} parent=0 // pred_check_branch
    %17 = sbr.rel (0) target = $region13
  $region12: #{qnetwork_forward.1} parent=0 // pred_region
    _
  $region13: #{qnetwork_forward.1} parent=0 // pred_fallthru
    _
  // Predicated region
  $region14: #{qnetwork_forward.1} parent=0 // pred_check
    _
  $region15: #{qnetwork_forward.1} parent=0 // pred_check_branch
    %19 = sbr.rel (0) target = $region17
  $region16: #{qnetwork_forward.1} parent=0 // pred_region
    _
  $region17: #{qnetwork_forward.1} parent=0 // pred_fallthru
    _
  // Predicated region
  $region18: #{qnetwork_forward.1} parent=0 // pred_check
    _
  $region19: #{qnetwork_forward.1} parent=0 // pred_check_branch
    %21 = sbr.rel (0) target = $region21
  $region20: #{qnetwork_forward.1} parent=0 // pred_region
    _
  $region21: #{qnetwork_forward.1} parent=0 // pred_fallthru
    _
  // Predicated region
  $region22: #{qnetwork_forward.1} parent=0 // pred_check
    _
  $region23: #{qnetwork_forward.1} parent=0 // pred_check_branch
    %23 = sbr.rel (0) target = $region25
  $region24: #{qnetwork_forward.1} parent=0 // pred_region
    _
  $region25: #{qnetwork_forward.1} parent=0 // pred_fallthru
    _
  // Predicated region
  $region26: #{qnetwork_forward.1} parent=0 // pred_check
    _
  $region27: #{qnetwork_forward.1} parent=0 // pred_check_branch
    %25 = sbr.rel (0) target = $region29
  $region28: #{qnetwork_forward.1} parent=0 // pred_region
    _
  $region29: #{qnetwork_forward.1} parent=0 // pred_fallthru
    _
  %v26 = vld [vmem:[%s0] sm:$0xff]
  %v27 = vld [vmem:[%s1] sm:$0xff]
  %v28 = vld [vmem:[%s1 + $0x8] sm:$0xff]
  %v29 = vld [vmem:[%s1 + $0x10] sm:$0xff]
  %v30 = vld [vmem:[%s1 + $0x18] sm:$0xff]
  %v31 = vld [vmem:[%s1 + $0x20] sm:$0xff]
  %v32 = vld [vmem:[%s1 + $0x28] sm:$0xff]
  %v33 = vld [vmem:[%s1 + $0x30] sm:$0xff]
  %v34 = vld [vmem:[%s1 + $0x38] sm:$0xff]
  %v35 = vld [vmem:[%s2] sm:$0xff]
  %v36 = vld [vmem:[%s2 + $0x8] sm:$0xff]
  %v37 = vld [vmem:[%s2 + $0x10] sm:$0xff]
  %v38 = vld [vmem:[%s2 + $0x18] sm:$0xff]
  %v39 = vld [vmem:[%s2 + $0x20] sm:$0xff]
  %v40 = vld [vmem:[%s2 + $0x28] sm:$0xff]
  %v41 = vld [vmem:[%s2 + $0x30] sm:$0xff]
  %v42 = vld [vmem:[%s2 + $0x38] sm:$0xff]
  %44 = vset.pattern.permute.xlu0 0
  %45 = vperm.xlu0 %44, %v35
  %v46 = vpop.permute.xlu0 %45
  %49 = vset.pattern.permute.xlu0 0
  %50 = vperm.xlu0 %49, %v36
  %v51 = vpop.permute.xlu0 %50
  %54 = vset.pattern.permute.xlu0 0
  %55 = vperm.xlu0 %54, %v37
  %v56 = vpop.permute.xlu0 %55
  %59 = vset.pattern.permute.xlu0 0
  %60 = vperm.xlu0 %59, %v38
  %v61 = vpop.permute.xlu0 %60
  %64 = vset.pattern.permute.xlu0 0
  %65 = vperm.xlu0 %64, %v39
  %v66 = vpop.permute.xlu0 %65
  %69 = vset.pattern.permute.xlu0 0
  %70 = vperm.xlu0 %69, %v40
  %v71 = vpop.permute.xlu0 %70
  %74 = vset.pattern.permute.xlu0 0
  %75 = vperm.xlu0 %74, %v41
  %v76 = vpop.permute.xlu0 %75
  %79 = vset.pattern.permute.xlu0 0
  %80 = vperm.xlu0 %79, %v42
  %v81 = vpop.permute.xlu0 %80
  %vm83 = vcmask 64512
  %v85 = vsel %vm83, %v27, 0
  %v88 = vsel %vm83, %v28, 0
  %v91 = vsel %vm83, %v29, 0
  %v94 = vsel %vm83, %v30, 0
  %v97 = vsel %vm83, %v31, 0
  %v100 = vsel %vm83, %v32, 0
  %v103 = vsel %vm83, %v33, 0
  %v106 = vsel %vm83, %v34, 0
  %108 = vmatprep.subr.mxu0 0.0
  %109 = vmatpush1.msra.mxu0 %v26
  %110 = vmatprep.subr.mxu0 0.0
  %111 = vmatpush1.msra.mxu0 0.0
  %112 = vmatprep.subr.mxu0 0.0
  %113 = vmatpush1.msra.mxu0 0.0
  %114 = vmatprep.subr.mxu0 0.0
  %115 = vmatpush1.msra.mxu0 0.0
  %116 = vmatprep.subr.mxu0 0.0
  %117 = vmatpush1.msra.mxu0 0.0
  %118 = vmatprep.subr.mxu0 0.0
  %119 = vmatpush1.msra.mxu0 0.0
  %120 = vmatprep.subr.mxu0 0.0
  %121 = vmatpush1.msra.mxu0 0.0
  %122 = vmatprep.subr.mxu0 0.0
  %123 = vmatpush1.msra.mxu0 0.0
  %124 = vmatprep.subr.mxu0 0.0
  %125 = vmatpush1.msra.mxu0 0.0
  %126 = vmatprep.subr.mxu0 0.0
  %127 = vmatpush1.msra.mxu0 0.0
  %128 = vmatprep.subr.mxu0 0.0
  %129 = vmatpush1.msra.mxu0 0.0
  %130 = vmatprep.subr.mxu0 0.0
  %131 = vmatpush1.msra.mxu0 0.0
  %132 = vmatprep.subr.mxu0 0.0
  %133 = vmatpush1.msra.mxu0 0.0
  %134 = vmatprep.subr.mxu0 0.0
  %135 = vmatpush1.msra.mxu0 0.0
  %136 = vmatprep.subr.mxu0 0.0
  %137 = vmatpush1.msra.mxu0 0.0
  %138 = vmatprep.subr.mxu0 0.0
  %139 = vmatpush1.msra.mxu0 0.0
  %140 = vmatprep.subr.mxu0 0.0
  %141 = vmatpush1.msra.mxu0 0.0
  %142 = vmatprep.subr.mxu0 0.0
  %143 = vmatpush1.msra.mxu0 0.0
  %144 = vmatprep.subr.mxu0 0.0
  %145 = vmatpush1.msra.mxu0 0.0
  %146 = vmatprep.subr.mxu0 0.0
  %147 = vmatpush1.msra.mxu0 0.0
  %148 = vmatprep.subr.mxu0 0.0
  %149 = vmatpush1.msra.mxu0 0.0
  %150 = vmatprep.subr.mxu0 0.0
  %151 = vmatpush1.msra.mxu0 0.0
  %152 = vmatprep.subr.mxu0 0.0
  %153 = vmatpush1.msra.mxu0 0.0
  %154 = vmatprep.subr.mxu0 0.0
  %155 = vmatpush1.msra.mxu0 0.0
  %156 = vmatprep.subr.mxu0 0.0
  %157 = vmatpush1.msra.mxu0 0.0
  %158 = vmatprep.subr.mxu0 0.0
  %159 = vmatpush1.msra.mxu0 0.0
  %160 = vmatprep.subr.mxu0 0.0
  %161 = vmatpush1.msra.mxu0 0.0
  %162 = vmatprep.subr.mxu0 0.0
  %163 = vmatpush1.msra.mxu0 0.0
  %164 = vmatprep.subr.mxu0 0.0
  %165 = vmatpush1.msra.mxu0 0.0
  %166 = vmatprep.subr.mxu0 0.0
  %167 = vmatpush1.msra.mxu0 0.0
  %168 = vmatprep.subr.mxu0 0.0
  %169 = vmatpush1.msra.mxu0 0.0
  %170 = vmatprep.subr.mxu0 0.0
  %171 = vmatpush1.msra.mxu0 0.0
  %172 = vmatprep.mubr.f32.mxu0 0.0
  %173 = vmatmul.mubr.f32.gmra.mrb[0].mxu0 %v85
  %v174 = vpop.f32.mrb[0].mxu0
  %v175 = vadd.f32 %v46, %v174
  %v176 = vpop.f32.mrb[0].mxu0
  %177 = vmatprep.mubr.f32.mxu0 0.0
  %178 = vmatmul.mubr.f32.gmra.mrb[0].mxu0 %v88
  %v179 = vpop.f32.mrb[0].mxu0
  %v180 = vadd.f32 %v51, %v179
  %v181 = vpop.f32.mrb[0].mxu0
  %182 = vmatprep.mubr.f32.mxu0 0.0
  %183 = vmatmul.mubr.f32.gmra.mrb[0].mxu0 %v91
  %v184 = vpop.f32.mrb[0].mxu0
  %v185 = vadd.f32 %v56, %v184
  %v186 = vpop.f32.mrb[0].mxu0
  %187 = vmatprep.mubr.f32.mxu0 0.0
  %188 = vmatmul.mubr.f32.gmra.mrb[0].mxu0 %v94
  %v189 = vpop.f32.mrb[0].mxu0
  %v190 = vadd.f32 %v61, %v189
  %v191 = vpop.f32.mrb[0].mxu0
  %192 = vmatprep.mubr.f32.mxu0 0.0
  %193 = vmatmul.mubr.f32.gmra.mrb[0].mxu0 %v97
  %v194 = vpop.f32.mrb[0].mxu0
  %v195 = vadd.f32 %v66, %v194
  %v196 = vpop.f32.mrb[0].mxu0
  %197 = vmatprep.mubr.f32.mxu0 0.0
  %198 = vmatmul.mubr.f32.gmra.mrb[0].mxu0 %v100
  %v199 = vpop.f32.mrb[0].mxu0
  %v200 = vadd.f32 %v71, %v199
  %v201 = vpop.f32.mrb[0].mxu0
  %202 = vmatprep.mubr.f32.mxu0 0.0
  %203 = vmatmul.mubr.f32.gmra.mrb[0].mxu0 %v103
  %v204 = vpop.f32.mrb[0].mxu0
  %v205 = vadd.f32 %v76, %v204
  %v206 = vpop.f32.mrb[0].mxu0
  %207 = vmatprep.mubr.f32.mxu0 0.0
  %208 = vmatmul.mubr.f32.gmra.mrb[0].mxu0 %v106
  %v209 = vpop.f32.mrb[0].mxu0
  %v210 = vadd.f32 %v81, %v209
  %v211 = vpop.f32.mrb[0].mxu0
  %212 = vdwg.mxu0
  %v213 = vmax.f32 %v175, 0.0
  %v214 = vmax.f32 %v180, 0.0
  %v215 = vmax.f32 %v185, 0.0
  %v216 = vmax.f32 %v190, 0.0
  %v217 = vmax.f32 %v195, 0.0
  %v218 = vmax.f32 %v200, 0.0
  %v219 = vmax.f32 %v205, 0.0
  %v220 = vmax.f32 %v210, 0.0
  %v221 = vld [vmem:[%s3] sm:$0xff]
  %v222 = vld [vmem:[%s3 + $0x8] sm:$0xff]
  %v223 = vld [vmem:[%s3 + $0x10] sm:$0xff]
  %v224 = vld [vmem:[%s3 + $0x18] sm:$0xff]
  %v225 = vld [vmem:[%s4] sm:$0xff]
  %v226 = vld [vmem:[%s4 + $0x8] sm:$0xff]
  %v227 = vld [vmem:[%s4 + $0x10] sm:$0xff]
  %v228 = vld [vmem:[%s4 + $0x18] sm:$0xff]
  %230 = vset.pattern.permute.xlu0 0
  %231 = vperm.xlu0 %230, %v225
  %v232 = vpop.permute.xlu0 %231
  %235 = vset.pattern.permute.xlu0 0
  %236 = vperm.xlu0 %235, %v226
  %v237 = vpop.permute.xlu0 %236
  %240 = vset.pattern.permute.xlu0 0
  %241 = vperm.xlu0 %240, %v227
  %v242 = vpop.permute.xlu0 %241
  %245 = vset.pattern.permute.xlu0 0
  %246 = vperm.xlu0 %245, %v228
  %v247 = vpop.permute.xlu0 %246
  %vm249 = vcmask 523264
  %v251 = vsel %vm249, %v221, 0
  %v254 = vsel %vm249, %v222, 0
  %v257 = vsel %vm249, %v223, 0
  %v260 = vsel %vm249, %v224, 0
  %262 = vmatprep.subr.mxu0 0.0
  %263 = vmatpush1.msra.mxu0 %v213
  %264 = vmatprep.subr.mxu0 0.0
  %265 = vmatpush1.msra.mxu0 %v214
  %266 = vmatprep.subr.mxu0 0.0
  %267 = vmatpush1.msra.mxu0 %v215
  %268 = vmatprep.subr.mxu0 0.0
  %269 = vmatpush1.msra.mxu0 %v216
  %270 = vmatprep.subr.mxu0 0.0
  %271 = vmatpush1.msra.mxu0 %v217
  %272 = vmatprep.subr.mxu0 0.0
  %273 = vmatpush1.msra.mxu0 %v218
  %274 = vmatprep.subr.mxu0 0.0
  %275 = vmatpush1.msra.mxu0 %v219
  %276 = vmatprep.subr.mxu0 0.0
  %277 = vmatpush1.msra.mxu0 %v220
  %278 = vmatprep.subr.mxu0 0.0
  %279 = vmatpush1.msra.mxu0 0.0
  %280 = vmatprep.subr.mxu0 0.0
  %281 = vmatpush1.msra.mxu0 0.0
  %282 = vmatprep.subr.mxu0 0.0
  %283 = vmatpush1.msra.mxu0 0.0
  %284 = vmatprep.subr.mxu0 0.0
  %285 = vmatpush1.msra.mxu0 0.0
  %286 = vmatprep.subr.mxu0 0.0
  %287 = vmatpush1.msra.mxu0 0.0
  %288 = vmatprep.subr.mxu0 0.0
  %289 = vmatpush1.msra.mxu0 0.0
  %290 = vmatprep.subr.mxu0 0.0
  %291 = vmatpush1.msra.mxu0 0.0
  %292 = vmatprep.subr.mxu0 0.0
  %293 = vmatpush1.msra.mxu0 0.0
  %294 = vmatprep.subr.mxu0 0.0
  %295 = vmatpush1.msra.mxu0 0.0
  %296 = vmatprep.subr.mxu0 0.0
  %297 = vmatpush1.msra.mxu0 0.0
  %298 = vmatprep.subr.mxu0 0.0
  %299 = vmatpush1.msra.mxu0 0.0
  %300 = vmatprep.subr.mxu0 0.0
  %301 = vmatpush1.msra.mxu0 0.0
  %302 = vmatprep.subr.mxu0 0.0
  %303 = vmatpush1.msra.mxu0 0.0
  %304 = vmatprep.subr.mxu0 0.0
  %305 = vmatpush1.msra.mxu0 0.0
  %306 = vmatprep.subr.mxu0 0.0
  %307 = vmatpush1.msra.mxu0 0.0
  %308 = vmatprep.subr.mxu0 0.0
  %309 = vmatpush1.msra.mxu0 0.0
  %310 = vmatprep.subr.mxu0 0.0
  %311 = vmatpush1.msra.mxu0 0.0
  %312 = vmatprep.subr.mxu0 0.0
  %313 = vmatpush1.msra.mxu0 0.0
  %314 = vmatprep.subr.mxu0 0.0
  %315 = vmatpush1.msra.mxu0 0.0
  %316 = vmatprep.subr.mxu0 0.0
  %317 = vmatpush1.msra.mxu0 0.0
  %318 = vmatprep.subr.mxu0 0.0
  %319 = vmatpush1.msra.mxu0 0.0
  %320 = vmatprep.subr.mxu0 0.0
  %321 = vmatpush1.msra.mxu0 0.0
  %322 = vmatprep.subr.mxu0 0.0
  %323 = vmatpush1.msra.mxu0 0.0
  %324 = vmatprep.subr.mxu0 0.0
  %325 = vmatpush1.msra.mxu0 0.0
  %326 = vmatprep.mubr.f32.mxu0 0.0
  %327 = vmatmul.mubr.f32.gmra.mrb[0].mxu0 %v251
  %v328 = vpop.f32.mrb[0].mxu0
  %v329 = vadd.f32 %v232, %v328
  %v330 = vpop.f32.mrb[0].mxu0
  %331 = vmatprep.mubr.f32.mxu0 0.0
  %332 = vmatmul.mubr.f32.gmra.mrb[0].mxu0 %v254
  %v333 = vpop.f32.mrb[0].mxu0
  %v334 = vadd.f32 %v237, %v333
  %v335 = vpop.f32.mrb[0].mxu0
  %336 = vmatprep.mubr.f32.mxu0 0.0
  %337 = vmatmul.mubr.f32.gmra.mrb[0].mxu0 %v257
  %v338 = vpop.f32.mrb[0].mxu0
  %v339 = vadd.f32 %v242, %v338
  %v340 = vpop.f32.mrb[0].mxu0
  %341 = vmatprep.mubr.f32.mxu0 0.0
  %342 = vmatmul.mubr.f32.gmra.mrb[0].mxu0 %v260
  %v343 = vpop.f32.mrb[0].mxu0
  %v344 = vadd.f32 %v247, %v343
  %v345 = vpop.f32.mrb[0].mxu0
  %346 = vdwg.mxu0
  %v347 = vmax.f32 %v329, 0.0
  %v348 = vmax.f32 %v334, 0.0
  %v349 = vmax.f32 %v339, 0.0
  %v350 = vmax.f32 %v344, 0.0
  %v351 = vld [vmem:[%s5] sm:$0xf]
  %v352 = vld [vmem:[%s6] sm:$0xf]
  %354 = vset.pattern.permute.xlu0 0
  %355 = vperm.xlu0 %354, %v352
  %v356 = vpop.permute.xlu0 %355
  %vm358 = vcmask 261120
  %v360 = vsel %vm358, %v351, 0
  %362 = vmatprep.subr.mxu0 0.0
  %363 = vmatpush1.msra.mxu0 %v347
  %364 = vmatprep.subr.mxu0 0.0
  %365 = vmatpush1.msra.mxu0 %v348
  %366 = vmatprep.subr.mxu0 0.0
  %367 = vmatpush1.msra.mxu0 %v349
  %368 = vmatprep.subr.mxu0 0.0
  %369 = vmatpush1.msra.mxu0 %v350
  %370 = vmatprep.subr.mxu0 0.0
  %371 = vmatpush1.msra.mxu0 0.0
  %372 = vmatprep.subr.mxu0 0.0
  %373 = vmatpush1.msra.mxu0 0.0
  %374 = vmatprep.subr.mxu0 0.0
  %375 = vmatpush1.msra.mxu0 0.0
  %376 = vmatprep.subr.mxu0 0.0
  %377 = vmatpush1.msra.mxu0 0.0
  %378 = vmatprep.subr.mxu0 0.0
  %379 = vmatpush1.msra.mxu0 0.0
  %380 = vmatprep.subr.mxu0 0.0
  %381 = vmatpush1.msra.mxu0 0.0
  %382 = vmatprep.subr.mxu0 0.0
  %383 = vmatpush1.msra.mxu0 0.0
  %384 = vmatprep.subr.mxu0 0.0
  %385 = vmatpush1.msra.mxu0 0.0
  %386 = vmatprep.subr.mxu0 0.0
  %387 = vmatpush1.msra.mxu0 0.0
  %388 = vmatprep.subr.mxu0 0.0
  %389 = vmatpush1.msra.mxu0 0.0
  %390 = vmatprep.subr.mxu0 0.0
  %391 = vmatpush1.msra.mxu0 0.0
  %392 = vmatprep.subr.mxu0 0.0
  %393 = vmatpush1.msra.mxu0 0.0
  %394 = vmatprep.subr.mxu0 0.0
  %395 = vmatpush1.msra.mxu0 0.0
  %396 = vmatprep.subr.mxu0 0.0
  %397 = vmatpush1.msra.mxu0 0.0
  %398 = vmatprep.subr.mxu0 0.0
  %399 = vmatpush1.msra.mxu0 0.0
  %400 = vmatprep.subr.mxu0 0.0
  %401 = vmatpush1.msra.mxu0 0.0
  %402 = vmatprep.subr.mxu0 0.0
  %403 = vmatpush1.msra.mxu0 0.0
  %404 = vmatprep.subr.mxu0 0.0
  %405 = vmatpush1.msra.mxu0 0.0
  %406 = vmatprep.subr.mxu0 0.0
  %407 = vmatpush1.msra.mxu0 0.0
  %408 = vmatprep.subr.mxu0 0.0
  %409 = vmatpush1.msra.mxu0 0.0
  %410 = vmatprep.subr.mxu0 0.0
  %411 = vmatpush1.msra.mxu0 0.0
  %412 = vmatprep.subr.mxu0 0.0
  %413 = vmatpush1.msra.mxu0 0.0
  %414 = vmatprep.subr.mxu0 0.0
  %415 = vmatpush1.msra.mxu0 0.0
  %416 = vmatprep.subr.mxu0 0.0
  %417 = vmatpush1.msra.mxu0 0.0
  %418 = vmatprep.subr.mxu0 0.0
  %419 = vmatpush1.msra.mxu0 0.0
  %420 = vmatprep.subr.mxu0 0.0
  %421 = vmatpush1.msra.mxu0 0.0
  %422 = vmatprep.subr.mxu0 0.0
  %423 = vmatpush1.msra.mxu0 0.0
  %424 = vmatprep.subr.mxu0 0.0
  %425 = vmatpush1.msra.mxu0 0.0
  %426 = vmatprep.mubr.f32.mxu0 0.0
  %427 = vmatmul.mubr.f32.gmra.mrb[0].mxu0 %v360
  %v428 = vpop.f32.mrb[0].mxu0
  %v429 = vadd.f32 %v356, %v428
  %v430 = vpop.f32.mrb[0].mxu0
  %431 = vdwg.mxu0
  %vm432 = vcmask 11264
  %433 = vst.msk [vmem:[%s7] sm:$0xf] %vm432, %v429
  // Predicated region
  $region30: #{qnetwork_forward.1} parent=0 // pred_check
    _
  $region31: #{qnetwork_forward.1} parent=0 // pred_check_branch
    %435 = sbr.rel (0) target = $region33
  $region32: #{qnetwork_forward.1} parent=0 // pred_region
    _
  $region33: #{qnetwork_forward.1} parent=0 // pred_fallthru
    _
  // Predicated region
  $region34: #{qnetwork_forward.1} parent=0 // pred_check
    _
  $region35: #{qnetwork_forward.1} parent=0 // pred_check_branch
    %437 = sbr.rel (0) target = $region37
  $region36: #{qnetwork_forward.1} parent=0 // pred_region
    _
  $region37: #{qnetwork_forward.1} parent=0 // pred_fallthru
    _

</llo_original>
